<compile_context>
chip_gen: v5e
topology: v5e:2x2
jax: 0.10.0
libtpu: 0.0.40
codegen_flags: <defaults>
</compile_context>

<pallas_src>
import functools

import jax
import jax.numpy as jnp
from jax.experimental import pallas as pl
from jax.experimental.pallas import tpu as pltpu

LEAKY_ALPHA = 0.2        # LeakyReLU slope used by the reference GAT layer
MASK_FILL = -9e15        # value used for masked (non-edge) attention logits


def _gat_fused_kernel(x_ref, adj_ref, w_in_ref, w_out_ref, o_ref,
                      *, nheads, nhid, nclass):
    """Full GATBase forward on the (small) whole graph, single grid point.

    x_ref     : (N, Fin)                  node features
    adj_ref   : (N, N) int8               edge mask (adj > 0)
    w_in_ref  : (Fin, H*nhid + 2H)        [W_all | W_h@a1_h | W_h@a2_h]
    w_out_ref : (H*nhid, nclass + 2)      [W_out | W_out@a_out^T]
    o_ref     : (N, nclass)
    """
    x = x_ref[...]
    edge = adj_ref[...] != 0                       # computed once, reused by both layers
    hdim = nheads * nhid

    # One lane-dense MXU matmul yields all head projections AND both attention
    # coefficient columns per head (a1/a2 folded into the weights):
    #   proj = [Wh_all | f1_all | f2_all]
    proj = jnp.dot(x, w_in_ref[...], preferred_element_type=jnp.float32)  # (N, H*nhid+2H)
    wh_all = proj[:, :hdim]                                               # (N, H*nhid)
    f1_all = proj[:, hdim:hdim + nheads]                                  # (N, H)
    f2_t = proj[:, hdim + nheads:].T                                      # (H, N), hoisted transpose

    def masked_softmax(e):
        # LeakyReLU, edge mask, row softmax with exact division.
        e = jnp.where(e > 0, e, LEAKY_ALPHA * e)
        logits = jnp.where(edge, e, MASK_FILL)
        m = jnp.max(logits, axis=1, keepdims=True)
        p = jnp.exp(logits - m)
        return p / jnp.sum(p, axis=1, keepdims=True)

    # ---- first GAT layer: H heads, outputs lane-concatenated into one slab.
    # NOTE: attention/feature dropout of the reference layer is identity (eval mode).
    # TODO(synk): at realistic N, move heads to a fori_loop / grid axis and cast
    # matmul operands to bf16 (re-validating tolerance) to avoid vreg/VMEM blowup.
    hp_parts = []
    for h in range(nheads):
        e_h = f1_all[:, h:h + 1] + f2_t[h:h + 1, :]                       # (N, N)
        att = masked_softmax(e_h)
        hp_parts.append(jnp.dot(att, wh_all[:, h * nhid:(h + 1) * nhid],
                                preferred_element_type=jnp.float32))      # (N, nhid)
    hp_all = jnp.concatenate(hp_parts, axis=1)                            # (N, H*nhid)
    hp_all = jnp.where(hp_all > 0, hp_all, jnp.exp(hp_all) - 1.0)         # ELU (concat heads)

    # ---- output attention layer (concat=False -> no internal ELU); a single
    # K=H*nhid matmul produces [wh2 | f1_out | f2_out].
    proj2 = jnp.dot(hp_all, w_out_ref[...], preferred_element_type=jnp.float32)  # (N, nclass+2)
    wh2 = proj2[:, :nclass]
    e2 = proj2[:, nclass:nclass + 1] + proj2[:, nclass + 1:nclass + 2].T
    att2 = masked_softmax(e2)
    out = jnp.dot(att2, wh2, preferred_element_type=jnp.float32)
    out = jnp.where(out > 0, out, jnp.exp(out) - 1.0)                     # final F.elu
    o_ref[...] = out.astype(o_ref.dtype)


def gat_forward(x, adj, params):
    """GATBase.forward (eval mode) as a single fused pallas_call.

    x: (N, Fin), adj: (N, N). Returns (N, nclass).
    """
    # TODO(synk): dropout is omitted (training=False => F.dropout is identity).
    W_heads = params["W_heads"]          # (H, Fin, nhid)
    a_heads = params["a_heads"]          # (H, 2, nhid)
    W_out = params["W_out"][0]           # (H*nhid, nclass)
    a_out = params["a_out"][0]           # (2, nclass)

    H, Fin, nhid = W_heads.shape
    N = x.shape[0]
    nclass = W_out.shape[1]

    # All-head projection, heads concatenated along the output/lane axis:
    # w_all[:, h*nhid:(h+1)*nhid] = W_heads[h].
    w_all = jnp.transpose(W_heads, (1, 0, 2)).reshape(Fin, H * nhid)
    # Fold the attention vectors into the projection:  (x @ W_h) @ a_k == x @ (W_h @ a_k).
    a1_proj = jnp.einsum("hfd,hd->fh", W_heads, a_heads[:, 0, :])         # (Fin, H)
    a2_proj = jnp.einsum("hfd,hd->fh", W_heads, a_heads[:, 1, :])         # (Fin, H)
    w_in = jnp.concatenate([w_all, a1_proj, a2_proj], axis=1)             # (Fin, H*nhid+2H)

    # Same algebraic fusion for the output attention layer.
    w_out_cat = jnp.concatenate([W_out, W_out @ a_out.T], axis=1)         # (H*nhid, nclass+2)

    # int8 edge mask: 4x smaller N^2 HBM stream / VMEM footprint than f32 adj.
    edge_mask = (adj > 0).astype(jnp.int8)

    kernel = functools.partial(_gat_fused_kernel, nheads=H, nhid=nhid, nclass=nclass)

    # Whole-graph blocks: everything fits VMEM at these sizes, so no grid
    # (single invocation, no per-step overhead).
    # TODO(synk): for realistic graph sizes add a query-row grid axis marked
    # "parallel" (splits the node dim across v7x's two TensorCores) plus a kv
    # "arbitrary" axis with an online/flash-style softmax over int8 adj tiles.
    return pl.pallas_call(
        kernel,
        out_shape=jax.ShapeDtypeStruct((N, nclass), jnp.float32),
        in_specs=[pl.BlockSpec(memory_space=pltpu.MemorySpace.VMEM)] * 4,
        out_specs=pl.BlockSpec(memory_space=pltpu.MemorySpace.VMEM),
        compiler_params=pltpu.CompilerParams(vmem_limit_bytes=32 * 1024 * 1024),
    )(x, edge_mask, w_in, w_out_cat)


# ----------------------------- pure-JAX reference ----------------------------
def _head_ref(x, adj, w, a, apply_elu):
    wh = x @ w
    f1 = wh @ a[0][:, None]
    f2 = wh @ a[1][:, None]
    e = f1 + f2.T
    e = jnp.where(e > 0, e, LEAKY_ALPHA * e)
    logits = jnp.where(adj > 0, e, MASK_FILL)
    att = jax.nn.softmax(logits, axis=1)
    h = att @ wh
    return jnp.where(h > 0, h, jnp.exp(h) - 1.0) if apply_elu else h


def gat_forward_ref(x, adj, params):
    outs = [
        _head_ref(x, adj, params["W_heads"][h], params["a_heads"][h], True)
        for h in range(params["W_heads"].shape[0])
    ]
    x_cat = jnp.concatenate(outs, axis=1)
    h = _head_ref(x_cat, adj, params["W_out"][0], params["a_out"][0], False)
    return jnp.where(h > 0, h, jnp.exp(h) - 1.0)


# ---------------------------------- main --------------------------------------
if __name__ == "__main__":
    N, FIN, NHID, NHEADS, NCLASS = 16, 32, 8, 4, 8

    key = jax.random.PRNGKey(0)
    kx, kadj, kw, ka, kwo, kao = jax.random.split(key, 6)

    x = jax.random.normal(kx, (N, FIN), dtype=jnp.float32)

    # symmetric random adjacency with self-loops
    r = jax.random.uniform(kadj, (N, N))
    adj = ((r + r.T) * 0.5 > 0.6).astype(jnp.float32)
    adj = jnp.maximum(adj, jnp.eye(N, dtype=jnp.float32))

    gain = 1.414  # xavier_uniform_ gain used by the reference GAT layer
    lim_w = gain * jnp.sqrt(6.0 / (FIN + NHID))
    lim_a = gain * jnp.sqrt(6.0 / (2 * NHID + 1))
    lim_wo = gain * jnp.sqrt(6.0 / (NHEADS * NHID + NCLASS))
    lim_ao = gain * jnp.sqrt(6.0 / (2 * NCLASS + 1))

    params = {
        "W_heads": jax.random.uniform(
            kw, (NHEADS, FIN, NHID), minval=-lim_w, maxval=lim_w, dtype=jnp.float32
        ),
        "a_heads": jax.random.uniform(
            ka, (NHEADS, 2, NHID), minval=-lim_a, maxval=lim_a, dtype=jnp.float32
        ),
        "W_out": jax.random.uniform(
            kwo, (1, NHEADS * NHID, NCLASS), minval=-lim_wo, maxval=lim_wo,
            dtype=jnp.float32,
        ),
        "a_out": jax.random.uniform(
            kao, (1, 2, NCLASS), minval=-lim_ao, maxval=lim_ao, dtype=jnp.float32
        ),
    }

    out = jax.block_until_ready(jax.jit(gat_forward)(x, adj, params))
    ref = jax.block_until_ready(gat_forward_ref(x, adj, params))

    assert out.shape == (N, NCLASS), out.shape
    # Exact softmax division + f32 matmuls: the only deviation from the
    # reference is matmul re-association from folding a into W (<<1e-4).
    assert jnp.allclose(out, ref, atol=5e-4, rtol=5e-4), (
        float(jnp.max(jnp.abs(out - ref)))
    )
    print("KERNEL_OK")
</pallas_src>

<mosaic_0001>
module attributes {stable_mosaic.version = 11 : i64} {
  func.func @_gat_fused_kernel(%arg0: memref<16x32xf32, #tpu.memory_space<vmem>>, %arg1: memref<16x16xi8, #tpu.memory_space<vmem>>, %arg2: memref<32x40xf32, #tpu.memory_space<vmem>>, %arg3: memref<32x10xf32, #tpu.memory_space<vmem>>, %arg4: memref<16x8xf32, #tpu.memory_space<vmem>>) attributes {dimension_semantics = [], scalar_prefetch = 0 : i64, scratch_operands = 0 : i64, tpu.core_type = #tpu.core_type<tc>} {
    %c0 = arith.constant 0 : index
    %c0_0 = arith.constant 0 : index
    %0 = vector.load %arg0[%c0, %c0_0] : memref<16x32xf32, #tpu.memory_space<vmem>>, vector<16x32xf32>
    %c0_1 = arith.constant 0 : index
    %c0_2 = arith.constant 0 : index
    %1 = vector.load %arg1[%c0_1, %c0_2] : memref<16x16xi8, #tpu.memory_space<vmem>>, vector<16x16xi8>
    %c0_i8 = arith.constant 0 : i8
    %2 = vector.broadcast %c0_i8 : i8 to vector<16x16xi8>
    %3 = arith.cmpi ne, %1, %2 : vector<16x16xi8>
    %c0_3 = arith.constant 0 : index
    %c0_4 = arith.constant 0 : index
    %4 = vector.load %arg2[%c0_3, %c0_4] : memref<32x40xf32, #tpu.memory_space<vmem>>, vector<32x40xf32>
    %cst = arith.constant dense<0.000000e+00> : vector<16x40xf32>
    %5 = tpu.matmul %0, %4, %cst {dimension_numbers = #tpu.dot_dimension_numbers<[1], [0], [0], [1], [0, 0, 1, 1], [], []>} : vector<16x32xf32>, vector<32x40xf32>, vector<16x40xf32> -> vector<16x40xf32>
    %6 = vector.extract_strided_slice %5 {offsets = [0, 0], sizes = [16, 32], strides = [1, 1]} : vector<16x40xf32> to vector<16x32xf32>
    %7 = vector.extract_strided_slice %5 {offsets = [0, 32], sizes = [16, 4], strides = [1, 1]} : vector<16x40xf32> to vector<16x4xf32>
    %8 = vector.extract_strided_slice %5 {offsets = [0, 36], sizes = [16, 4], strides = [1, 1]} : vector<16x40xf32> to vector<16x4xf32>
    %9 = tpu.transpose %8, [1, 0] : vector<16x4xf32> -> vector<4x16xf32>
    %10 = vector.extract_strided_slice %7 {offsets = [0, 0], sizes = [16, 1], strides = [1, 1]} : vector<16x4xf32> to vector<16x1xf32>
    %11 = vector.extract_strided_slice %9 {offsets = [0, 0], sizes = [1, 16], strides = [1, 1]} : vector<4x16xf32> to vector<1x16xf32>
    %12 = vector.broadcast %10 : vector<16x1xf32> to vector<16x16xf32>
    %13 = vector.broadcast %11 : vector<1x16xf32> to vector<16x16xf32>
    %14 = arith.addf %12, %13 : vector<16x16xf32>
    %cst_5 = arith.constant 0.000000e+00 : f32
    %15 = vector.broadcast %cst_5 : f32 to vector<16x16xf32>
    %16 = arith.cmpf ogt, %14, %15 : vector<16x16xf32>
    %cst_6 = arith.constant 2.000000e-01 : f32
    %17 = vector.broadcast %cst_6 : f32 to vector<16x16xf32>
    %18 = arith.mulf %17, %14 : vector<16x16xf32>
    %19 = arith.select %16, %14, %18 : vector<16x16xi1>, vector<16x16xf32>
    %cst_7 = arith.constant -9.000000e+15 : f32
    %20 = vector.broadcast %cst_7 : f32 to vector<16x16xf32>
    %21 = arith.select %3, %19, %20 : vector<16x16xi1>, vector<16x16xf32>
    %cst_8 = arith.constant dense<0xFF800000> : vector<16xf32>
    %22 = vector.multi_reduction <maximumf>, %21, %cst_8 [1] : vector<16x16xf32> to vector<16xf32>
    %23 = vector.shape_cast %22 : vector<16xf32> to vector<16x1xf32>
    %24 = vector.broadcast %23 : vector<16x1xf32> to vector<16x16xf32>
    %25 = arith.subf %21, %24 : vector<16x16xf32>
    %26 = math.exp %25 : vector<16x16xf32>
    %cst_9 = arith.constant dense<0.000000e+00> : vector<16xf32>
    %27 = vector.multi_reduction <add>, %26, %cst_9 [1] : vector<16x16xf32> to vector<16xf32>
    %28 = vector.shape_cast %27 : vector<16xf32> to vector<16x1xf32>
    %29 = vector.broadcast %28 : vector<16x1xf32> to vector<16x16xf32>
    %30 = arith.divf %26, %29 : vector<16x16xf32>
    %31 = vector.extract_strided_slice %6 {offsets = [0, 0], sizes = [16, 8], strides = [1, 1]} : vector<16x32xf32> to vector<16x8xf32>
    %cst_10 = arith.constant dense<0.000000e+00> : vector<16x8xf32>
    %32 = tpu.matmul %30, %31, %cst_10 {dimension_numbers = #tpu.dot_dimension_numbers<[1], [0], [0], [1], [0, 0, 1, 1], [], []>} : vector<16x16xf32>, vector<16x8xf32>, vector<16x8xf32> -> vector<16x8xf32>
    %33 = vector.extract_strided_slice %7 {offsets = [0, 1], sizes = [16, 1], strides = [1, 1]} : vector<16x4xf32> to vector<16x1xf32>
    %34 = vector.extract_strided_slice %9 {offsets = [1, 0], sizes = [1, 16], strides = [1, 1]} : vector<4x16xf32> to vector<1x16xf32>
    %35 = vector.broadcast %33 : vector<16x1xf32> to vector<16x16xf32>
    %36 = vector.broadcast %34 : vector<1x16xf32> to vector<16x16xf32>
    %37 = arith.addf %35, %36 : vector<16x16xf32>
    %cst_11 = arith.constant 0.000000e+00 : f32
    %38 = vector.broadcast %cst_11 : f32 to vector<16x16xf32>
    %39 = arith.cmpf ogt, %37, %38 : vector<16x16xf32>
    %cst_12 = arith.constant 2.000000e-01 : f32
    %40 = vector.broadcast %cst_12 : f32 to vector<16x16xf32>
    %41 = arith.mulf %40, %37 : vector<16x16xf32>
    %42 = arith.select %39, %37, %41 : vector<16x16xi1>, vector<16x16xf32>
    %cst_13 = arith.constant -9.000000e+15 : f32
    %43 = vector.broadcast %cst_13 : f32 to vector<16x16xf32>
    %44 = arith.select %3, %42, %43 : vector<16x16xi1>, vector<16x16xf32>
    %cst_14 = arith.constant dense<0xFF800000> : vector<16xf32>
    %45 = vector.multi_reduction <maximumf>, %44, %cst_14 [1] : vector<16x16xf32> to vector<16xf32>
    %46 = vector.shape_cast %45 : vector<16xf32> to vector<16x1xf32>
    %47 = vector.broadcast %46 : vector<16x1xf32> to vector<16x16xf32>
    %48 = arith.subf %44, %47 : vector<16x16xf32>
    %49 = math.exp %48 : vector<16x16xf32>
    %cst_15 = arith.constant dense<0.000000e+00> : vector<16xf32>
    %50 = vector.multi_reduction <add>, %49, %cst_15 [1] : vector<16x16xf32> to vector<16xf32>
    %51 = vector.shape_cast %50 : vector<16xf32> to vector<16x1xf32>
    %52 = vector.broadcast %51 : vector<16x1xf32> to vector<16x16xf32>
    %53 = arith.divf %49, %52 : vector<16x16xf32>
    %54 = vector.extract_strided_slice %6 {offsets = [0, 8], sizes = [16, 8], strides = [1, 1]} : vector<16x32xf32> to vector<16x8xf32>
    %cst_16 = arith.constant dense<0.000000e+00> : vector<16x8xf32>
    %55 = tpu.matmul %53, %54, %cst_16 {dimension_numbers = #tpu.dot_dimension_numbers<[1], [0], [0], [1], [0, 0, 1, 1], [], []>} : vector<16x16xf32>, vector<16x8xf32>, vector<16x8xf32> -> vector<16x8xf32>
    %56 = vector.extract_strided_slice %7 {offsets = [0, 2], sizes = [16, 1], strides = [1, 1]} : vector<16x4xf32> to vector<16x1xf32>
    %57 = vector.extract_strided_slice %9 {offsets = [2, 0], sizes = [1, 16], strides = [1, 1]} : vector<4x16xf32> to vector<1x16xf32>
    %58 = vector.broadcast %56 : vector<16x1xf32> to vector<16x16xf32>
    %59 = vector.broadcast %57 : vector<1x16xf32> to vector<16x16xf32>
    %60 = arith.addf %58, %59 : vector<16x16xf32>
    %cst_17 = arith.constant 0.000000e+00 : f32
    %61 = vector.broadcast %cst_17 : f32 to vector<16x16xf32>
    %62 = arith.cmpf ogt, %60, %61 : vector<16x16xf32>
    %cst_18 = arith.constant 2.000000e-01 : f32
    %63 = vector.broadcast %cst_18 : f32 to vector<16x16xf32>
    %64 = arith.mulf %63, %60 : vector<16x16xf32>
    %65 = arith.select %62, %60, %64 : vector<16x16xi1>, vector<16x16xf32>
    %cst_19 = arith.constant -9.000000e+15 : f32
    %66 = vector.broadcast %cst_19 : f32 to vector<16x16xf32>
    %67 = arith.select %3, %65, %66 : vector<16x16xi1>, vector<16x16xf32>
    %cst_20 = arith.constant dense<0xFF800000> : vector<16xf32>
    %68 = vector.multi_reduction <maximumf>, %67, %cst_20 [1] : vector<16x16xf32> to vector<16xf32>
    %69 = vector.shape_cast %68 : vector<16xf32> to vector<16x1xf32>
    %70 = vector.broadcast %69 : vector<16x1xf32> to vector<16x16xf32>
    %71 = arith.subf %67, %70 : vector<16x16xf32>
    %72 = math.exp %71 : vector<16x16xf32>
    %cst_21 = arith.constant dense<0.000000e+00> : vector<16xf32>
    %73 = vector.multi_reduction <add>, %72, %cst_21 [1] : vector<16x16xf32> to vector<16xf32>
    %74 = vector.shape_cast %73 : vector<16xf32> to vector<16x1xf32>
    %75 = vector.broadcast %74 : vector<16x1xf32> to vector<16x16xf32>
    %76 = arith.divf %72, %75 : vector<16x16xf32>
    %77 = vector.extract_strided_slice %6 {offsets = [0, 16], sizes = [16, 8], strides = [1, 1]} : vector<16x32xf32> to vector<16x8xf32>
    %cst_22 = arith.constant dense<0.000000e+00> : vector<16x8xf32>
    %78 = tpu.matmul %76, %77, %cst_22 {dimension_numbers = #tpu.dot_dimension_numbers<[1], [0], [0], [1], [0, 0, 1, 1], [], []>} : vector<16x16xf32>, vector<16x8xf32>, vector<16x8xf32> -> vector<16x8xf32>
    %79 = vector.extract_strided_slice %7 {offsets = [0, 3], sizes = [16, 1], strides = [1, 1]} : vector<16x4xf32> to vector<16x1xf32>
    %80 = vector.extract_strided_slice %9 {offsets = [3, 0], sizes = [1, 16], strides = [1, 1]} : vector<4x16xf32> to vector<1x16xf32>
    %81 = vector.broadcast %79 : vector<16x1xf32> to vector<16x16xf32>
    %82 = vector.broadcast %80 : vector<1x16xf32> to vector<16x16xf32>
    %83 = arith.addf %81, %82 : vector<16x16xf32>
    %cst_23 = arith.constant 0.000000e+00 : f32
    %84 = vector.broadcast %cst_23 : f32 to vector<16x16xf32>
    %85 = arith.cmpf ogt, %83, %84 : vector<16x16xf32>
    %cst_24 = arith.constant 2.000000e-01 : f32
    %86 = vector.broadcast %cst_24 : f32 to vector<16x16xf32>
    %87 = arith.mulf %86, %83 : vector<16x16xf32>
    %88 = arith.select %85, %83, %87 : vector<16x16xi1>, vector<16x16xf32>
    %cst_25 = arith.constant -9.000000e+15 : f32
    %89 = vector.broadcast %cst_25 : f32 to vector<16x16xf32>
    %90 = arith.select %3, %88, %89 : vector<16x16xi1>, vector<16x16xf32>
    %cst_26 = arith.constant dense<0xFF800000> : vector<16xf32>
    %91 = vector.multi_reduction <maximumf>, %90, %cst_26 [1] : vector<16x16xf32> to vector<16xf32>
    %92 = vector.shape_cast %91 : vector<16xf32> to vector<16x1xf32>
    %93 = vector.broadcast %92 : vector<16x1xf32> to vector<16x16xf32>
    %94 = arith.subf %90, %93 : vector<16x16xf32>
    %95 = math.exp %94 : vector<16x16xf32>
    %cst_27 = arith.constant dense<0.000000e+00> : vector<16xf32>
    %96 = vector.multi_reduction <add>, %95, %cst_27 [1] : vector<16x16xf32> to vector<16xf32>
    %97 = vector.shape_cast %96 : vector<16xf32> to vector<16x1xf32>
    %98 = vector.broadcast %97 : vector<16x1xf32> to vector<16x16xf32>
    %99 = arith.divf %95, %98 : vector<16x16xf32>
    %100 = vector.extract_strided_slice %6 {offsets = [0, 24], sizes = [16, 8], strides = [1, 1]} : vector<16x32xf32> to vector<16x8xf32>
    %cst_28 = arith.constant dense<0.000000e+00> : vector<16x8xf32>
    %101 = tpu.matmul %99, %100, %cst_28 {dimension_numbers = #tpu.dot_dimension_numbers<[1], [0], [0], [1], [0, 0, 1, 1], [], []>} : vector<16x16xf32>, vector<16x8xf32>, vector<16x8xf32> -> vector<16x8xf32>
    %102 = tpu.concatenate %32, %55, %78, %101 in 1 : vector<16x8xf32>, vector<16x8xf32>, vector<16x8xf32>, vector<16x8xf32> -> vector<16x32xf32>
    %cst_29 = arith.constant 0.000000e+00 : f32
    %103 = vector.broadcast %cst_29 : f32 to vector<16x32xf32>
    %104 = arith.cmpf ogt, %102, %103 : vector<16x32xf32>
    %105 = math.exp %102 : vector<16x32xf32>
    %cst_30 = arith.constant 1.000000e+00 : f32
    %106 = vector.broadcast %cst_30 : f32 to vector<16x32xf32>
    %107 = arith.subf %105, %106 : vector<16x32xf32>
    %108 = arith.select %104, %102, %107 : vector<16x32xi1>, vector<16x32xf32>
    %c0_31 = arith.constant 0 : index
    %c0_32 = arith.constant 0 : index
    %109 = vector.load %arg3[%c0_31, %c0_32] : memref<32x10xf32, #tpu.memory_space<vmem>>, vector<32x10xf32>
    %cst_33 = arith.constant dense<0.000000e+00> : vector<16x10xf32>
    %110 = tpu.matmul %108, %109, %cst_33 {dimension_numbers = #tpu.dot_dimension_numbers<[1], [0], [0], [1], [0, 0, 1, 1], [], []>} : vector<16x32xf32>, vector<32x10xf32>, vector<16x10xf32> -> vector<16x10xf32>
    %111 = vector.extract_strided_slice %110 {offsets = [0, 0], sizes = [16, 8], strides = [1, 1]} : vector<16x10xf32> to vector<16x8xf32>
    %112 = vector.extract_strided_slice %110 {offsets = [0, 8], sizes = [16, 1], strides = [1, 1]} : vector<16x10xf32> to vector<16x1xf32>
    %113 = vector.extract_strided_slice %110 {offsets = [0, 9], sizes = [16, 1], strides = [1, 1]} : vector<16x10xf32> to vector<16x1xf32>
    %114 = tpu.transpose %113, [1, 0] : vector<16x1xf32> -> vector<1x16xf32>
    %115 = vector.broadcast %112 : vector<16x1xf32> to vector<16x16xf32>
    %116 = vector.broadcast %114 : vector<1x16xf32> to vector<16x16xf32>
    %117 = arith.addf %115, %116 : vector<16x16xf32>
    %cst_34 = arith.constant 0.000000e+00 : f32
    %118 = vector.broadcast %cst_34 : f32 to vector<16x16xf32>
    %119 = arith.cmpf ogt, %117, %118 : vector<16x16xf32>
    %cst_35 = arith.constant 2.000000e-01 : f32
    %120 = vector.broadcast %cst_35 : f32 to vector<16x16xf32>
    %121 = arith.mulf %120, %117 : vector<16x16xf32>
    %122 = arith.select %119, %117, %121 : vector<16x16xi1>, vector<16x16xf32>
    %cst_36 = arith.constant -9.000000e+15 : f32
    %123 = vector.broadcast %cst_36 : f32 to vector<16x16xf32>
    %124 = arith.select %3, %122, %123 : vector<16x16xi1>, vector<16x16xf32>
    %cst_37 = arith.constant dense<0xFF800000> : vector<16xf32>
    %125 = vector.multi_reduction <maximumf>, %124, %cst_37 [1] : vector<16x16xf32> to vector<16xf32>
    %126 = vector.shape_cast %125 : vector<16xf32> to vector<16x1xf32>
    %127 = vector.broadcast %126 : vector<16x1xf32> to vector<16x16xf32>
    %128 = arith.subf %124, %127 : vector<16x16xf32>
    %129 = math.exp %128 : vector<16x16xf32>
    %cst_38 = arith.constant dense<0.000000e+00> : vector<16xf32>
    %130 = vector.multi_reduction <add>, %129, %cst_38 [1] : vector<16x16xf32> to vector<16xf32>
    %131 = vector.shape_cast %130 : vector<16xf32> to vector<16x1xf32>
    %132 = vector.broadcast %131 : vector<16x1xf32> to vector<16x16xf32>
    %133 = arith.divf %129, %132 : vector<16x16xf32>
    %cst_39 = arith.constant dense<0.000000e+00> : vector<16x8xf32>
    %134 = tpu.matmul %133, %111, %cst_39 {dimension_numbers = #tpu.dot_dimension_numbers<[1], [0], [0], [1], [0, 0, 1, 1], [], []>} : vector<16x16xf32>, vector<16x8xf32>, vector<16x8xf32> -> vector<16x8xf32>
    %cst_40 = arith.constant 0.000000e+00 : f32
    %135 = vector.broadcast %cst_40 : f32 to vector<16x8xf32>
    %136 = arith.cmpf ogt, %134, %135 : vector<16x8xf32>
    %137 = math.exp %134 : vector<16x8xf32>
    %cst_41 = arith.constant 1.000000e+00 : f32
    %138 = vector.broadcast %cst_41 : f32 to vector<16x8xf32>
    %139 = arith.subf %137, %138 : vector<16x8xf32>
    %140 = arith.select %136, %134, %139 : vector<16x8xi1>, vector<16x8xf32>
    %c0_42 = arith.constant 0 : index
    %c0_43 = arith.constant 0 : index
    %141 = vector.load %arg4[%c0_42, %c0_43] : memref<16x8xf32, #tpu.memory_space<vmem>>, vector<16x8xf32>
    tpu.vector_store %arg4[%c0_42, %c0_43], %140 {strides = array<i32>} : memref<16x8xf32, #tpu.memory_space<vmem>>, vector<16x8xf32>,
    return
  }
}

</mosaic_0001>

<llo_original>
// kernel: gat_forward.1
$region0: #{gat_forward.1}
  #allocation0 [shape = 'u32[]', space=smem, size = 0x4, offset = 0x4, fixed_abs, tag = 'smem constant byte address 0x4 - core index']
  #allocation1 [shape = 'u32[72,128]{1,0:T(1,128)}', space=vmem, size = 0x9000, scoped, tag = 'internal scratch']
  %s0 = inlined_call_operand.vmem [shape: f32[16,32], index: 0, kind: input, shape index: {}]
  %s1 = inlined_call_operand.vmem [shape: s8[16,16], index: 1, kind: input, shape index: {}]
  %s2 = inlined_call_operand.vmem [shape: f32[32,40], index: 2, kind: input, shape index: {}]
  %s3 = inlined_call_operand.vmem [shape: f32[32,10], index: 3, kind: input, shape index: {}]
  %s4 = inlined_call_operand.vmem [shape: f32[16,8], index: 4, kind: output, shape index: {}]
  %s5 = sld [smem:[#allocation0]]
  $region26: #{gat_forward.1} parent=0
    _
  %s7 = ssub.s32 1, %s5
  %s8 = scalar_select 0, %s7, %s5
  // Predicated region
  $region2: #{gat_forward.1} parent=0 // pred_check
    _
  $region3: #{gat_forward.1} parent=0 // pred_check_branch
    %10 = sbr.rel (0) target = $region5
  $region4: #{gat_forward.1} parent=0 // pred_region
    _
  $region5: #{gat_forward.1} parent=0 // pred_fallthru
    _
  // Predicated region
  $region6: #{gat_forward.1} parent=0 // pred_check
    _
  $region7: #{gat_forward.1} parent=0 // pred_check_branch
    %12 = sbr.rel (0) target = $region9
  $region8: #{gat_forward.1} parent=0 // pred_region
    _
  $region9: #{gat_forward.1} parent=0 // pred_fallthru
    _
  // Predicated region
  $region10: #{gat_forward.1} parent=0 // pred_check
    _
  $region11: #{gat_forward.1} parent=0 // pred_check_branch
    %14 = sbr.rel (0) target = $region13
  $region12: #{gat_forward.1} parent=0 // pred_region
    _
  $region13: #{gat_forward.1} parent=0 // pred_fallthru
    _
  // Predicated region
  $region14: #{gat_forward.1} parent=0 // pred_check
    _
  $region15: #{gat_forward.1} parent=0 // pred_check_branch
    %16 = sbr.rel (0) target = $region17
  $region16: #{gat_forward.1} parent=0 // pred_region
    _
  $region17: #{gat_forward.1} parent=0 // pred_fallthru
    _
  %v19 = vld [vmem:[%s0] sm:$0xff]
  %v20 = vld [vmem:[%s0 + $0x8] sm:$0xff]
  %v21 = vld [vmem:[%s1] sm:$0x3]
  %v22 = vld [vmem:[%s1 + $0x2] sm:$0x3]
  %vm23 = vnez %v21
  %vm24 = vnez %v22
  %v25 = vld [vmem:[%s2] sm:$0xff]
  %v26 = vld [vmem:[%s2 + $0x8] sm:$0xff]
  %v27 = vld [vmem:[%s2 + $0x10] sm:$0xff]
  %v28 = vld [vmem:[%s2 + $0x18] sm:$0xff]
  %vm29 = vcmask 261120
  %v31 = vsel %vm29, %v19, 0
  %v34 = vsel %vm29, %v20, 0
  %36 = vmatpush.msra.mxu0 0.0
  %37 = vmatpush.msra.mxu0 0.0
  %38 = vmatpush.msra.mxu0 0.0
  %39 = vmatpush.msra.mxu0 0.0
  %40 = vmatpush.msra.mxu0 0.0
  %41 = vmatpush.msra.mxu0 0.0
  %42 = vmatpush.msra.mxu0 0.0
  %43 = vmatpush.msra.mxu0 0.0
  %44 = vmatpush.msra.mxu0 0.0
  %45 = vmatpush.msra.mxu0 0.0
  %46 = vmatpush.msra.mxu0 0.0
  %47 = vmatpush.msra.mxu0 0.0
  %48 = vmatpush.msra.mxu0 %v28
  %49 = vmatpush.msra.mxu0 %v27
  %50 = vmatpush.msra.mxu0 %v26
  %51 = vmatpush.msra.mxu0 %v25
  %52 = vmatmul.f32.gmra.mxu0 %v31
  %v53 = vpop.f32.mrf.mxu0
  %v54 = vadd.f32 0.0, %v53
  %55 = vmatmul.f32.gmra.mxu0 %v34
  %v56 = vpop.f32.mrf.mxu0
  %v57 = vadd.f32 0.0, %v56
  %58 = vdwg.mxu0
  %61 = vrot.lane.b32.xlu0 %v54, 92
  %v62 = vpop.permute.xlu0 %61
  %63 = vrot.lane.b32.xlu0 %v57, 92
  %v64 = vpop.permute.xlu0 %63
  %67 = vxpose.xlu0.b32.start [1/16] %v62, 128
  %68 = vxpose.xlu0.b32.cont [2/16] %v64, 128
  %69 = vxpose.xlu0.b32.cont [3/16] 0.0, 128
  %70 = vxpose.xlu0.b32.cont [4/16] 0.0, 128
  %71 = vxpose.xlu0.b32.cont [5/16] 0.0, 128
  %72 = vxpose.xlu0.b32.cont [6/16] 0.0, 128
  %73 = vxpose.xlu0.b32.cont [7/16] 0.0, 128
  %74 = vxpose.xlu0.b32.cont [8/16] 0.0, 128
  %75 = vxpose.xlu0.b32.cont [9/16] 0.0, 128
  %76 = vxpose.xlu0.b32.cont [10/16] 0.0, 128
  %77 = vxpose.xlu0.b32.cont [11/16] 0.0, 128
  %78 = vxpose.xlu0.b32.cont [12/16] 0.0, 128
  %79 = vxpose.xlu0.b32.cont [13/16] 0.0, 128
  %80 = vxpose.xlu0.b32.cont [14/16] 0.0, 128
  %81 = vxpose.xlu0.b32.cont [15/16] 0.0, 128
  %82 = vxpose.xlu0.b32.end [16/16] 0.0, 128
  %v83 = vpop.trf.xlu0
  %v84 = vpop.trf.xlu0
  %v85 = vpop.trf.xlu0
  %v86 = vpop.trf.xlu0
  %v87 = vpop.trf.xlu0
  %v88 = vpop.trf.xlu0
  %v89 = vpop.trf.xlu0
  %v90 = vpop.trf.xlu0
  %v91 = vpop.trf.xlu0
  %v92 = vpop.trf.xlu0
  %v93 = vpop.trf.xlu0
  %v94 = vpop.trf.xlu0
  %v95 = vpop.trf.xlu0
  %v96 = vpop.trf.xlu0
  %v97 = vpop.trf.xlu0
  %v98 = vpop.trf.xlu0
  %99 = vset.pattern.permute.xlu0 32
  %100 = vperm.xlu0 %99, %v54
  %v101 = vpop.permute.xlu0 %100
  %103 = vset.pattern.permute.xlu0 32
  %104 = vperm.xlu0 %103, %v57
  %v105 = vpop.permute.xlu0 %104
  %v107 = vperm.slane %v83, 0
  %v108 = vadd.f32 %v101, %v107
  %v109 = vadd.f32 %v105, %v107
  %vm110 = vcmp.gt.f32.partialorder %v108, 0.0
  %vm111 = vcmp.gt.f32.partialorder %v109, 0.0
  %v112 = vmul.f32 %v108, 0.2
  %v113 = vmul.f32 %v109, 0.2
  %v114 = vsel %vm110, %v108, %v112
  %v115 = vsel %vm111, %v109, %v113
  %v116 = vsel %vm23, 16843009, 0
  %v117 = vsel %vm24, 16843009, 0
  %v118 = vunpack.c.0.s8 %v116
  %v119 = vunpack.c.0.s8 %v117
  %vm120 = vcmp.ne.s32.totalorder %v118, 0
  %vm121 = vcmp.ne.s32.totalorder %v119, 0
  %v122 = vsel %vm120, %v114, -9e+15
  %v123 = vsel %vm121, %v115, -9e+15
  %vm124 = vcmask 130048
  %v125 = vsel %vm124, %v122, -inf
  %126 = vmax.xlane.f32.xlu0 %v125
  %v127 = vpop.xlane.xlu0 %126
  %v128 = vsel %vm124, %v123, -inf
  %129 = vmax.xlane.f32.xlu0 %v128
  %v130 = vpop.xlane.xlu0 %129
  %v131 = vsub.f32 %v122, %v127
  %v132 = vsub.f32 %v123, %v130
  %v133 = vmul.f32 %v131, 1.442695
  %v134 = vpow.pop %v133
  %v135 = vmul.f32 %v132, 1.442695
  %v136 = vpow.pop %v135
  %v137 = vsel %vm124, %v134, 0.0
  %138 = vadd.xlane.f32.xlu0 %v137
  %v139 = vpop.xlane.xlu0 %138
  %v140 = vsel %vm124, %v136, 0.0
  %141 = vadd.xlane.f32.xlu0 %v140
  %v142 = vpop.xlane.xlu0 %141
  %v143 = vrcp.pop %v139
  %v144 = vmul.f32 %v139, %v143
  %v145 = vsub.f32 1.0, %v144
  %v146 = vmul.f32 %v143, %v145
  %v147 = vadd.f32 %v143, %v146
  %vm148 = vweird.f32 %v139
  %vm149 = vweird.f32 %v143
  %vm150 = vmor %vm148, %vm149
  %v151 = vsel %vm150, %v143, %v147
  %v152 = vand.u32 2147483647, %v139
  %vm153 = vcmp.eq.f32.partialorder %v152, 8.507059e+37
  %v154 = vand.u32 %v139, 2147483648
  %v155 = vor.u32 1.1754944e-38, %v154
  %v156 = vsel %vm153, %v155, %v151
  %v157 = vmul.f32 %v134, %v156
  %v158 = vrcp.pop %v142
  %v159 = vmul.f32 %v142, %v158
  %v160 = vsub.f32 1.0, %v159
  %v161 = vmul.f32 %v158, %v160
  %v162 = vadd.f32 %v158, %v161
  %vm163 = vweird.f32 %v142
  %vm164 = vweird.f32 %v158
  %vm165 = vmor %vm163, %vm164
  %v166 = vsel %vm165, %v158, %v162
  %v167 = vand.u32 2147483647, %v142
  %vm168 = vcmp.eq.f32.partialorder %v167, 8.507059e+37
  %v169 = vand.u32 %v142, 2147483648
  %v170 = vor.u32 1.1754944e-38, %v169
  %v171 = vsel %vm168, %v170, %v166
  %v172 = vmul.f32 %v136, %v171
  %v174 = vsel %vm124, %v157, 0
  %v177 = vsel %vm124, %v172, 0
  %179 = vmatpush.msra.mxu0 0.0
  %180 = vmatpush.msra.mxu0 0.0
  %181 = vmatpush.msra.mxu0 0.0
  %182 = vmatpush.msra.mxu0 0.0
  %183 = vmatpush.msra.mxu0 0.0
  %184 = vmatpush.msra.mxu0 0.0
  %185 = vmatpush.msra.mxu0 0.0
  %186 = vmatpush.msra.mxu0 0.0
  %187 = vmatpush.msra.mxu0 0.0
  %188 = vmatpush.msra.mxu0 0.0
  %189 = vmatpush.msra.mxu0 0.0
  %190 = vmatpush.msra.mxu0 0.0
  %191 = vmatpush.msra.mxu0 0.0
  %192 = vmatpush.msra.mxu0 0.0
  %193 = vmatpush.msra.mxu0 %v57
  %194 = vmatpush.msra.mxu0 %v54
  %195 = vmatmul.f32.gmra.mxu0 %v174
  %v196 = vpop.f32.mrf.mxu0
  %v197 = vadd.f32 0.0, %v196
  %198 = vmatmul.f32.gmra.mxu0 %v177
  %v199 = vpop.f32.mrf.mxu0
  %v200 = vadd.f32 0.0, %v199
  %201 = vdwg.mxu0
  %202 = vset.pattern.permute.xlu0 33
  %203 = vperm.xlu0 %202, %v54
  %v204 = vpop.permute.xlu0 %203
  %206 = vset.pattern.permute.xlu0 33
  %207 = vperm.xlu0 %206, %v57
  %v208 = vpop.permute.xlu0 %207
  %v210 = vperm.slane %v83, 1
  %v211 = vadd.f32 %v204, %v210
  %v212 = vadd.f32 %v208, %v210
  %vm213 = vcmp.gt.f32.partialorder %v211, 0.0
  %vm214 = vcmp.gt.f32.partialorder %v212, 0.0
  %v215 = vmul.f32 %v211, 0.2
  %v216 = vmul.f32 %v212, 0.2
  %v217 = vsel %vm213, %v211, %v215
  %v218 = vsel %vm214, %v212, %v216
  %v219 = vsel %vm120, %v217, -9e+15
  %v220 = vsel %vm121, %v218, -9e+15
  %v221 = vsel %vm124, %v219, -inf
  %222 = vmax.xlane.f32.xlu0 %v221
  %v223 = vpop.xlane.xlu0 %222
  %v224 = vsel %vm124, %v220, -inf
  %225 = vmax.xlane.f32.xlu0 %v224
  %v226 = vpop.xlane.xlu0 %225
  %v227 = vsub.f32 %v219, %v223
  %v228 = vsub.f32 %v220, %v226
  %v229 = vmul.f32 %v227, 1.442695
  %v230 = vpow.pop %v229
  %v231 = vmul.f32 %v228, 1.442695
  %v232 = vpow.pop %v231
  %v233 = vsel %vm124, %v230, 0.0
  %234 = vadd.xlane.f32.xlu0 %v233
  %v235 = vpop.xlane.xlu0 %234
  %v236 = vsel %vm124, %v232, 0.0
  %237 = vadd.xlane.f32.xlu0 %v236
  %v238 = vpop.xlane.xlu0 %237
  %v239 = vrcp.pop %v235
  %v240 = vmul.f32 %v235, %v239
  %v241 = vsub.f32 1.0, %v240
  %v242 = vmul.f32 %v239, %v241
  %v243 = vadd.f32 %v239, %v242
  %vm244 = vweird.f32 %v235
  %vm245 = vweird.f32 %v239
  %vm246 = vmor %vm244, %vm245
  %v247 = vsel %vm246, %v239, %v243
  %v248 = vand.u32 2147483647, %v235
  %vm249 = vcmp.eq.f32.partialorder %v248, 8.507059e+37
  %v250 = vand.u32 %v235, 2147483648
  %v251 = vor.u32 1.1754944e-38, %v250
  %v252 = vsel %vm249, %v251, %v247
  %v253 = vmul.f32 %v230, %v252
  %v254 = vrcp.pop %v238
  %v255 = vmul.f32 %v238, %v254
  %v256 = vsub.f32 1.0, %v255
  %v257 = vmul.f32 %v254, %v256
  %v258 = vadd.f32 %v254, %v257
  %vm259 = vweird.f32 %v238
  %vm260 = vweird.f32 %v254
  %vm261 = vmor %vm259, %vm260
  %v262 = vsel %vm261, %v254, %v258
  %v263 = vand.u32 2147483647, %v238
  %vm264 = vcmp.eq.f32.partialorder %v263, 8.507059e+37
  %v265 = vand.u32 %v238, 2147483648
  %v266 = vor.u32 1.1754944e-38, %v265
  %v267 = vsel %vm264, %v266, %v262
  %v268 = vmul.f32 %v232, %v267
  %269 = vrot.lane.b32.xlu0 %v54, 120
  %v270 = vpop.permute.xlu0 %269
  %271 = vrot.lane.b32.xlu0 %v57, 120
  %v272 = vpop.permute.xlu0 %271
  %v276 = vsel %vm124, %v253, 0
  %v279 = vsel %vm124, %v268, 0
  %281 = vmatpush.msra.mxu0 0.0
  %282 = vmatpush.msra.mxu0 0.0
  %283 = vmatpush.msra.mxu0 0.0
  %284 = vmatpush.msra.mxu0 0.0
  %285 = vmatpush.msra.mxu0 0.0
  %286 = vmatpush.msra.mxu0 0.0
  %287 = vmatpush.msra.mxu0 0.0
  %288 = vmatpush.msra.mxu0 0.0
  %289 = vmatpush.msra.mxu0 0.0
  %290 = vmatpush.msra.mxu0 0.0
  %291 = vmatpush.msra.mxu0 0.0
  %292 = vmatpush.msra.mxu0 0.0
  %293 = vmatpush.msra.mxu0 0.0
  %294 = vmatpush.msra.mxu0 0.0
  %295 = vmatpush.msra.mxu0 %v272
  %296 = vmatpush.msra.mxu0 %v270
  %297 = vmatmul.f32.gmra.mxu0 %v276
  %v298 = vpop.f32.mrf.mxu0
  %v299 = vadd.f32 0.0, %v298
  %300 = vmatmul.f32.gmra.mxu0 %v279
  %v301 = vpop.f32.mrf.mxu0
  %v302 = vadd.f32 0.0, %v301
  %303 = vdwg.mxu0
  %304 = vset.pattern.permute.xlu0 34
  %305 = vperm.xlu0 %304, %v54
  %v306 = vpop.permute.xlu0 %305
  %308 = vset.pattern.permute.xlu0 34
  %309 = vperm.xlu0 %308, %v57
  %v310 = vpop.permute.xlu0 %309
  %v312 = vperm.slane %v83, 2
  %v313 = vadd.f32 %v306, %v312
  %v314 = vadd.f32 %v310, %v312
  %vm315 = vcmp.gt.f32.partialorder %v313, 0.0
  %vm316 = vcmp.gt.f32.partialorder %v314, 0.0
  %v317 = vmul.f32 %v313, 0.2
  %v318 = vmul.f32 %v314, 0.2
  %v319 = vsel %vm315, %v313, %v317
  %v320 = vsel %vm316, %v314, %v318
  %v321 = vsel %vm120, %v319, -9e+15
  %v322 = vsel %vm121, %v320, -9e+15
  %v323 = vsel %vm124, %v321, -inf
  %324 = vmax.xlane.f32.xlu0 %v323
  %v325 = vpop.xlane.xlu0 %324
  %v326 = vsel %vm124, %v322, -inf
  %327 = vmax.xlane.f32.xlu0 %v326
  %v328 = vpop.xlane.xlu0 %327
  %v329 = vsub.f32 %v321, %v325
  %v330 = vsub.f32 %v322, %v328
  %v331 = vmul.f32 %v329, 1.442695
  %v332 = vpow.pop %v331
  %v333 = vmul.f32 %v330, 1.442695
  %v334 = vpow.pop %v333
  %v335 = vsel %vm124, %v332, 0.0
  %336 = vadd.xlane.f32.xlu0 %v335
  %v337 = vpop.xlane.xlu0 %336
  %v338 = vsel %vm124, %v334, 0.0
  %339 = vadd.xlane.f32.xlu0 %v338
  %v340 = vpop.xlane.xlu0 %339
  %v341 = vrcp.pop %v337
  %v342 = vmul.f32 %v337, %v341
  %v343 = vsub.f32 1.0, %v342
  %v344 = vmul.f32 %v341, %v343
  %v345 = vadd.f32 %v341, %v344
  %vm346 = vweird.f32 %v337
  %vm347 = vweird.f32 %v341
  %vm348 = vmor %vm346, %vm347
  %v349 = vsel %vm348, %v341, %v345
  %v350 = vand.u32 2147483647, %v337
  %vm351 = vcmp.eq.f32.partialorder %v350, 8.507059e+37
  %v352 = vand.u32 %v337, 2147483648
  %v353 = vor.u32 1.1754944e-38, %v352
  %v354 = vsel %vm351, %v353, %v349
  %v355 = vmul.f32 %v332, %v354
  %v356 = vrcp.pop %v340
  %v357 = vmul.f32 %v340, %v356
  %v358 = vsub.f32 1.0, %v357
  %v359 = vmul.f32 %v356, %v358
  %v360 = vadd.f32 %v356, %v359
  %vm361 = vweird.f32 %v340
  %vm362 = vweird.f32 %v356
  %vm363 = vmor %vm361, %vm362
  %v364 = vsel %vm363, %v356, %v360
  %v365 = vand.u32 2147483647, %v340
  %vm366 = vcmp.eq.f32.partialorder %v365, 8.507059e+37
  %v367 = vand.u32 %v340, 2147483648
  %v368 = vor.u32 1.1754944e-38, %v367
  %v369 = vsel %vm366, %v368, %v364
  %v370 = vmul.f32 %v334, %v369
  %371 = vrot.lane.b32.xlu0 %v54, 112
  %v372 = vpop.permute.xlu0 %371
  %373 = vrot.lane.b32.xlu0 %v57, 112
  %v374 = vpop.permute.xlu0 %373
  %v378 = vsel %vm124, %v355, 0
  %v381 = vsel %vm124, %v370, 0
  %383 = vmatpush.msra.mxu0 0.0
  %384 = vmatpush.msra.mxu0 0.0
  %385 = vmatpush.msra.mxu0 0.0
  %386 = vmatpush.msra.mxu0 0.0
  %387 = vmatpush.msra.mxu0 0.0
  %388 = vmatpush.msra.mxu0 0.0
  %389 = vmatpush.msra.mxu0 0.0
  %390 = vmatpush.msra.mxu0 0.0
  %391 = vmatpush.msra.mxu0 0.0
  %392 = vmatpush.msra.mxu0 0.0
  %393 = vmatpush.msra.mxu0 0.0
  %394 = vmatpush.msra.mxu0 0.0
  %395 = vmatpush.msra.mxu0 0.0
  %396 = vmatpush.msra.mxu0 0.0
  %397 = vmatpush.msra.mxu0 %v374
  %398 = vmatpush.msra.mxu0 %v372
  %399 = vmatmul.f32.gmra.mxu0 %v378
  %v400 = vpop.f32.mrf.mxu0
  %v401 = vadd.f32 0.0, %v400
  %402 = vmatmul.f32.gmra.mxu0 %v381
  %v403 = vpop.f32.mrf.mxu0
  %v404 = vadd.f32 0.0, %v403
  %405 = vdwg.mxu0
  %406 = vset.pattern.permute.xlu0 35
  %407 = vperm.xlu0 %406, %v54
  %v408 = vpop.permute.xlu0 %407
  %410 = vset.pattern.permute.xlu0 35
  %411 = vperm.xlu0 %410, %v57
  %v412 = vpop.permute.xlu0 %411
  %v414 = vperm.slane %v83, 3
  %v415 = vadd.f32 %v408, %v414
  %v416 = vadd.f32 %v412, %v414
  %vm417 = vcmp.gt.f32.partialorder %v415, 0.0
  %vm418 = vcmp.gt.f32.partialorder %v416, 0.0
  %v419 = vmul.f32 %v415, 0.2
  %v420 = vmul.f32 %v416, 0.2
  %v421 = vsel %vm417, %v415, %v419
  %v422 = vsel %vm418, %v416, %v420
  %v423 = vsel %vm120, %v421, -9e+15
  %v424 = vsel %vm121, %v422, -9e+15
  %v425 = vsel %vm124, %v423, -inf
  %426 = vmax.xlane.f32.xlu0 %v425
  %v427 = vpop.xlane.xlu0 %426
  %v428 = vsel %vm124, %v424, -inf
  %429 = vmax.xlane.f32.xlu0 %v428
  %v430 = vpop.xlane.xlu0 %429
  %v431 = vsub.f32 %v423, %v427
  %v432 = vsub.f32 %v424, %v430
  %v433 = vmul.f32 %v431, 1.442695
  %v434 = vpow.pop %v433
  %v435 = vmul.f32 %v432, 1.442695
  %v436 = vpow.pop %v435
  %v437 = vsel %vm124, %v434, 0.0
  %438 = vadd.xlane.f32.xlu0 %v437
  %v439 = vpop.xlane.xlu0 %438
  %v440 = vsel %vm124, %v436, 0.0
  %441 = vadd.xlane.f32.xlu0 %v440
  %v442 = vpop.xlane.xlu0 %441
  %v443 = vrcp.pop %v439
  %v444 = vmul.f32 %v439, %v443
  %v445 = vsub.f32 1.0, %v444
  %v446 = vmul.f32 %v443, %v445
  %v447 = vadd.f32 %v443, %v446
  %vm448 = vweird.f32 %v439
  %vm449 = vweird.f32 %v443
  %vm450 = vmor %vm448, %vm449
  %v451 = vsel %vm450, %v443, %v447
  %v452 = vand.u32 2147483647, %v439
  %vm453 = vcmp.eq.f32.partialorder %v452, 8.507059e+37
  %v454 = vand.u32 %v439, 2147483648
  %v455 = vor.u32 1.1754944e-38, %v454
  %v456 = vsel %vm453, %v455, %v451
  %v457 = vmul.f32 %v434, %v456
  %v458 = vrcp.pop %v442
  %v459 = vmul.f32 %v442, %v458
  %v460 = vsub.f32 1.0, %v459
  %v461 = vmul.f32 %v458, %v460
  %v462 = vadd.f32 %v458, %v461
  %vm463 = vweird.f32 %v442
  %vm464 = vweird.f32 %v458
  %vm465 = vmor %vm463, %vm464
  %v466 = vsel %vm465, %v458, %v462
  %v467 = vand.u32 2147483647, %v442
  %vm468 = vcmp.eq.f32.partialorder %v467, 8.507059e+37
  %v469 = vand.u32 %v442, 2147483648
  %v470 = vor.u32 1.1754944e-38, %v469
  %v471 = vsel %vm468, %v470, %v466
  %v472 = vmul.f32 %v436, %v471
  %473 = vrot.lane.b32.xlu0 %v54, 104
  %v474 = vpop.permute.xlu0 %473
  %475 = vrot.lane.b32.xlu0 %v57, 104
  %v476 = vpop.permute.xlu0 %475
  %v480 = vsel %vm124, %v457, 0
  %v483 = vsel %vm124, %v472, 0
  %485 = vmatpush.msra.mxu0 0.0
  %486 = vmatpush.msra.mxu0 0.0
  %487 = vmatpush.msra.mxu0 0.0
  %488 = vmatpush.msra.mxu0 0.0
  %489 = vmatpush.msra.mxu0 0.0
  %490 = vmatpush.msra.mxu0 0.0
  %491 = vmatpush.msra.mxu0 0.0
  %492 = vmatpush.msra.mxu0 0.0
  %493 = vmatpush.msra.mxu0 0.0
  %494 = vmatpush.msra.mxu0 0.0
  %495 = vmatpush.msra.mxu0 0.0
  %496 = vmatpush.msra.mxu0 0.0
  %497 = vmatpush.msra.mxu0 0.0
  %498 = vmatpush.msra.mxu0 0.0
  %499 = vmatpush.msra.mxu0 %v476
  %500 = vmatpush.msra.mxu0 %v474
  %501 = vmatmul.f32.gmra.mxu0 %v480
  %v502 = vpop.f32.mrf.mxu0
  %v503 = vadd.f32 0.0, %v502
  %504 = vmatmul.f32.gmra.mxu0 %v483
  %v505 = vpop.f32.mrf.mxu0
  %v506 = vadd.f32 0.0, %v505
  %507 = vdwg.mxu0
  %510 = vrot.lane.b32.xlu0 %v299, 8
  %v511 = vpop.permute.xlu0 %510
  %512 = vrot.lane.b32.xlu0 %v302, 8
  %v513 = vpop.permute.xlu0 %512
  %518 = vrot.lane.b32.xlu0 %v401, 16
  %v519 = vpop.permute.xlu0 %518
  %520 = vrot.lane.b32.xlu0 %v404, 16
  %v521 = vpop.permute.xlu0 %520
  %526 = vrot.lane.b32.xlu0 %v503, 24
  %v527 = vpop.permute.xlu0 %526
  %528 = vrot.lane.b32.xlu0 %v506, 24
  %v529 = vpop.permute.xlu0 %528
  %vm532 = vcmask 64512
  %v533 = vsel %vm532, %v197, %v511
  %v534 = vsel %vm532, %v200, %v513
  %v535 = vsel %vm124, %v533, %v519
  %v536 = vsel %vm124, %v534, %v521
  %vm537 = vcmask 195584
  %v538 = vsel %vm537, %v535, %v527
  %v539 = vsel %vm537, %v536, %v529
  %vm540 = vcmp.gt.f32.partialorder %v538, 0.0
  %vm541 = vcmp.gt.f32.partialorder %v539, 0.0
  %v542 = vmul.f32 %v538, 1.442695
  %v543 = vpow.pop %v542
  %v544 = vmul.f32 %v539, 1.442695
  %v545 = vpow.pop %v544
  %v546 = vsub.f32 %v543, 1.0
  %v547 = vsub.f32 %v545, 1.0
  %v548 = vsel %vm540, %v538, %v546
  %v549 = vsel %vm541, %v539, %v547
  %v550 = vld [vmem:[%s3] sm:$0xff]
  %v551 = vld [vmem:[%s3 + $0x8] sm:$0xff]
  %v552 = vld [vmem:[%s3 + $0x10] sm:$0xff]
  %v553 = vld [vmem:[%s3 + $0x18] sm:$0xff]
  %v555 = vsel %vm29, %v548, 0
  %v558 = vsel %vm29, %v549, 0
  %560 = vmatpush.msra.mxu0 0.0
  %561 = vmatpush.msra.mxu0 0.0
  %562 = vmatpush.msra.mxu0 0.0
  %563 = vmatpush.msra.mxu0 0.0
  %564 = vmatpush.msra.mxu0 0.0
  %565 = vmatpush.msra.mxu0 0.0
  %566 = vmatpush.msra.mxu0 0.0
  %567 = vmatpush.msra.mxu0 0.0
  %568 = vmatpush.msra.mxu0 0.0
  %569 = vmatpush.msra.mxu0 0.0
  %570 = vmatpush.msra.mxu0 0.0
  %571 = vmatpush.msra.mxu0 0.0
  %572 = vmatpush.msra.mxu0 %v553
  %573 = vmatpush.msra.mxu0 %v552
  %574 = vmatpush.msra.mxu0 %v551
  %575 = vmatpush.msra.mxu0 %v550
  %576 = vmatmul.f32.gmra.mxu0 %v555
  %v577 = vpop.f32.mrf.mxu0
  %v578 = vadd.f32 0.0, %v577
  %579 = vmatmul.f32.gmra.mxu0 %v558
  %v580 = vpop.f32.mrf.mxu0
  %v581 = vadd.f32 0.0, %v580
  %582 = vdwg.mxu0
  %585 = vrot.lane.b32.xlu0 %v578, 119
  %v586 = vpop.permute.xlu0 %585
  %587 = vrot.lane.b32.xlu0 %v581, 119
  %v588 = vpop.permute.xlu0 %587
  %591 = vxpose.xlu0.b32.start [1/16] %v586, 128
  %592 = vxpose.xlu0.b32.cont [2/16] %v588, 128
  %593 = vxpose.xlu0.b32.cont [3/16] 0.0, 128
  %594 = vxpose.xlu0.b32.cont [4/16] 0.0, 128
  %595 = vxpose.xlu0.b32.cont [5/16] 0.0, 128
  %596 = vxpose.xlu0.b32.cont [6/16] 0.0, 128
  %597 = vxpose.xlu0.b32.cont [7/16] 0.0, 128
  %598 = vxpose.xlu0.b32.cont [8/16] 0.0, 128
  %599 = vxpose.xlu0.b32.cont [9/16] 0.0, 128
  %600 = vxpose.xlu0.b32.cont [10/16] 0.0, 128
  %601 = vxpose.xlu0.b32.cont [11/16] 0.0, 128
  %602 = vxpose.xlu0.b32.cont [12/16] 0.0, 128
  %603 = vxpose.xlu0.b32.cont [13/16] 0.0, 128
  %604 = vxpose.xlu0.b32.cont [14/16] 0.0, 128
  %605 = vxpose.xlu0.b32.cont [15/16] 0.0, 128
  %606 = vxpose.xlu0.b32.end [16/16] 0.0, 128
  %v607 = vpop.trf.xlu0
  %v608 = vpop.trf.xlu0
  %v609 = vpop.trf.xlu0
  %v610 = vpop.trf.xlu0
  %v611 = vpop.trf.xlu0
  %v612 = vpop.trf.xlu0
  %v613 = vpop.trf.xlu0
  %v614 = vpop.trf.xlu0
  %v615 = vpop.trf.xlu0
  %v616 = vpop.trf.xlu0
  %v617 = vpop.trf.xlu0
  %v618 = vpop.trf.xlu0
  %v619 = vpop.trf.xlu0
  %v620 = vpop.trf.xlu0
  %v621 = vpop.trf.xlu0
  %v622 = vpop.trf.xlu0
  %623 = vset.pattern.permute.xlu0 8
  %624 = vperm.xlu0 %623, %v578
  %v625 = vpop.permute.xlu0 %624
  %627 = vset.pattern.permute.xlu0 8
  %628 = vperm.xlu0 %627, %v581
  %v629 = vpop.permute.xlu0 %628
  %v631 = vperm.slane %v607, 0
  %v632 = vadd.f32 %v625, %v631
  %v633 = vadd.f32 %v629, %v631
  %vm634 = vcmp.gt.f32.partialorder %v632, 0.0
  %vm635 = vcmp.gt.f32.partialorder %v633, 0.0
  %v636 = vmul.f32 %v632, 0.2
  %v637 = vmul.f32 %v633, 0.2
  %v638 = vsel %vm634, %v632, %v636
  %v639 = vsel %vm635, %v633, %v637
  %v640 = vsel %vm120, %v638, -9e+15
  %v641 = vsel %vm121, %v639, -9e+15
  %v642 = vsel %vm124, %v640, -inf
  %643 = vmax.xlane.f32.xlu0 %v642
  %v644 = vpop.xlane.xlu0 %643
  %v645 = vsel %vm124, %v641, -inf
  %646 = vmax.xlane.f32.xlu0 %v645
  %v647 = vpop.xlane.xlu0 %646
  %v648 = vsub.f32 %v640, %v644
  %v649 = vsub.f32 %v641, %v647
  %v650 = vmul.f32 %v648, 1.442695
  %v651 = vpow.pop %v650
  %v652 = vmul.f32 %v649, 1.442695
  %v653 = vpow.pop %v652
  %v654 = vsel %vm124, %v651, 0.0
  %655 = vadd.xlane.f32.xlu0 %v654
  %v656 = vpop.xlane.xlu0 %655
  %v657 = vsel %vm124, %v653, 0.0
  %658 = vadd.xlane.f32.xlu0 %v657
  %v659 = vpop.xlane.xlu0 %658
  %v660 = vrcp.pop %v656
  %v661 = vmul.f32 %v656, %v660
  %v662 = vsub.f32 1.0, %v661
  %v663 = vmul.f32 %v660, %v662
  %v664 = vadd.f32 %v660, %v663
  %vm665 = vweird.f32 %v656
  %vm666 = vweird.f32 %v660
  %vm667 = vmor %vm665, %vm666
  %v668 = vsel %vm667, %v660, %v664
  %v669 = vand.u32 2147483647, %v656
  %vm670 = vcmp.eq.f32.partialorder %v669, 8.507059e+37
  %v671 = vand.u32 %v656, 2147483648
  %v672 = vor.u32 1.1754944e-38, %v671
  %v673 = vsel %vm670, %v672, %v668
  %v674 = vmul.f32 %v651, %v673
  %v675 = vrcp.pop %v659
  %v676 = vmul.f32 %v659, %v675
  %v677 = vsub.f32 1.0, %v676
  %v678 = vmul.f32 %v675, %v677
  %v679 = vadd.f32 %v675, %v678
  %vm680 = vweird.f32 %v659
  %vm681 = vweird.f32 %v675
  %vm682 = vmor %vm680, %vm681
  %v683 = vsel %vm682, %v675, %v679
  %v684 = vand.u32 2147483647, %v659
  %vm685 = vcmp.eq.f32.partialorder %v684, 8.507059e+37
  %v686 = vand.u32 %v659, 2147483648
  %v687 = vor.u32 1.1754944e-38, %v686
  %v688 = vsel %vm685, %v687, %v683
  %v689 = vmul.f32 %v653, %v688
  %v691 = vsel %vm124, %v674, 0
  %v694 = vsel %vm124, %v689, 0
  %696 = vmatpush.msra.mxu0 0.0
  %697 = vmatpush.msra.mxu0 0.0
  %698 = vmatpush.msra.mxu0 0.0
  %699 = vmatpush.msra.mxu0 0.0
  %700 = vmatpush.msra.mxu0 0.0
  %701 = vmatpush.msra.mxu0 0.0
  %702 = vmatpush.msra.mxu0 0.0
  %703 = vmatpush.msra.mxu0 0.0
  %704 = vmatpush.msra.mxu0 0.0
  %705 = vmatpush.msra.mxu0 0.0
  %706 = vmatpush.msra.mxu0 0.0
  %707 = vmatpush.msra.mxu0 0.0
  %708 = vmatpush.msra.mxu0 0.0
  %709 = vmatpush.msra.mxu0 0.0
  %710 = vmatpush.msra.mxu0 %v581
  %711 = vmatpush.msra.mxu0 %v578
  %712 = vmatmul.f32.gmra.mxu0 %v691
  %v713 = vpop.f32.mrf.mxu0
  %v714 = vadd.f32 0.0, %v713
  %715 = vmatmul.f32.gmra.mxu0 %v694
  %v716 = vpop.f32.mrf.mxu0
  %v717 = vadd.f32 0.0, %v716
  %718 = vdwg.mxu0
  %vm719 = vcmp.gt.f32.partialorder %v714, 0.0
  %vm720 = vcmp.gt.f32.partialorder %v717, 0.0
  %v721 = vmul.f32 %v714, 1.442695
  %v722 = vpow.pop %v721
  %v723 = vmul.f32 %v717, 1.442695
  %v724 = vpow.pop %v723
  %v725 = vsub.f32 %v722, 1.0
  %v726 = vsub.f32 %v724, 1.0
  %v727 = vsel %vm719, %v714, %v725
  %v728 = vsel %vm720, %v717, %v726
  %729 = vst.msk [vmem:[%s4] sm:$0xff] %vm532, %v727
  %730 = vst.msk [vmem:[%s4 + $0x8] sm:$0xff] %vm532, %v728
  // Predicated region
  $region18: #{gat_forward.1} parent=0 // pred_check
    _
  $region19: #{gat_forward.1} parent=0 // pred_check_branch
    %732 = sbr.rel (0) target = $region21
  $region20: #{gat_forward.1} parent=0 // pred_region
    _
  $region21: #{gat_forward.1} parent=0 // pred_fallthru
    _
  // Predicated region
  $region22: #{gat_forward.1} parent=0 // pred_check
    _
  $region23: #{gat_forward.1} parent=0 // pred_check_branch
    %734 = sbr.rel (0) target = $region25
  $region24: #{gat_forward.1} parent=0 // pred_region
    _
  $region25: #{gat_forward.1} parent=0 // pred_fallthru
    _

</llo_original>
